<compile_context>
chip_gen: v6e
topology: v6e:2x2x1
jax: 0.10.0
libtpu: 0.0.40
codegen_flags: <defaults>
</compile_context>

<pallas_src>
import functools

import jax
import jax.numpy as jnp
import numpy as np
from jax.experimental import pallas as pl
from jax.experimental.pallas import tpu as pltpu

BN_EPS = 1e-5    # torch.nn.BatchNorm1d default eps
L2_EPS = 1e-12   # torch F.normalize default eps


# ----------------------------------------------------------------------------
# Kernel 1: all per-class LinearBlocks fused into one lane-dense matmul
#           (BN already folded into the weights) + ReLU + token-mean pooling.
#           Grid iterates over class-column tiles of the concatenated weights.
# ----------------------------------------------------------------------------
def class_linear_kernel(x_ref, pool_ref, w_ref, b_ref, o_ref):
    # x_ref   : (B*L, C)  shared input block (compute dtype, tokens flattened)
    # pool_ref: (B, B*L)  mean-pooling matrix, f32 (1/L on each batch's tokens)
    # w_ref   : (C, G*C)  BN-folded, concatenated class weights (compute dtype)
    # b_ref   : (1, G*C)  BN-folded biases, f32
    # o_ref   : (B, G*C)  per-class token-mean features (classes on lanes), f32
    y = jnp.dot(x_ref[...], w_ref[...], preferred_element_type=jnp.float32)
    y = jnp.maximum(y + b_ref[...], 0.0)                       # fc(+BN folded) + ReLU
    # Dropout(p=0.5) is the identity in eval mode.
    o_ref[...] = jnp.dot(pool_ref[...], y,                     # mean over tokens (MXU)
                         preferred_element_type=jnp.float32)


# ----------------------------------------------------------------------------
# Kernel 2: GNN ('dots' metric) + classification head; each grid step handles
#           one batch slice (batch-parallel for v7x's two TensorCores).
# ----------------------------------------------------------------------------
def gnn_head_kernel(fv_ref, wuv_ref, buv_ref, bnsc_ref, bnsh_ref, scn_ref,
                    fvo_ref, cl_ref, *, neighbor_num):
    # fv_ref : (Bb, N, C) f32   wuv_ref: (C, 2C) = [U | V] (compute dtype)
    # buv_ref: (1, 2C) f32      bnsc/bnsh: (N, 1) folded BatchNorm1d(num_classes)
    # scn_ref: (N, C) f32       relu'd + L2-normalized sc (precomputed host-side)
    # fvo_ref: (Bb, N, C) f32   cl_ref: (Bb, N, 1) f32
    Bb, N, C = fv_ref.shape
    fv = fv_ref[...]

    # --- 'dots' similarity (f32 so adjacency matches the f32 reference) ---
    si = jnp.einsum('bic,bjc->bij', fv, fv,
                    preferred_element_type=jnp.float32)        # (Bb, N, N)

    # --- k-th-largest threshold, exact torch.topk (with duplicates) semantics:
    #     start at the row max and step down to the next distinct value until
    #     >= neighbor_num entries are above the threshold.  k-1 passes instead
    #     of N strictly-greater counting passes.
    thr = jnp.max(si, axis=-1, keepdims=True)
    for _ in range(neighbor_num - 1):
        cnt = jnp.sum((si >= thr).astype(jnp.float32), axis=-1, keepdims=True)
        nxt = jnp.max(jnp.where(si < thr, si, -jnp.inf), axis=-1, keepdims=True)
        thr = jnp.where(cnt >= float(neighbor_num), thr, nxt)
    adj = (si >= thr).astype(jnp.float32)

    # --- normalize_digraph:  A = D^-1/2 adj D^-1/2 ---
    deg = jnp.sum(adj, axis=-1, keepdims=True)                 # >= neighbor_num >= 1
    dinv = jax.lax.rsqrt(deg)

    # --- merged U|V projection: bf16 operands, f32 accumulation.  Batched
    #     einsum keeps the 3-D layout (no (Bb*N, C) reshape / relayout). ---
    fv_c = fv.astype(wuv_ref.dtype)
    wuv_b = jnp.broadcast_to(wuv_ref[...][None], (Bb, C, 2 * C))
    uv = jnp.einsum('bnc,bcd->bnd', fv_c, wuv_b,
                    preferred_element_type=jnp.float32) + buv_ref[...]
    ux = uv[:, :, :C]
    vx = uv[:, :, C:]

    # D^-1/2 adj D^-1/2 @ vx  ==  dinv * (adj @ (dinv * vx))  (avoids a transpose)
    agg = dinv * jnp.einsum('bij,bjc->bic', adj, dinv * vx,
                            preferred_element_type=jnp.float32)

    # --- BN(num_classes) in eval mode, folded to per-node scale/shift ---
    z = (agg + ux) * bnsc_ref[...][None] + bnsh_ref[...][None]
    fv_out = jnp.maximum(fv + z, 0.0)                          # relu(x + BN(...))
    fvo_ref[...] = fv_out

    # --- classification: cosine(f_v, relu(sc)); sc already normalized ---
    ss = jnp.sum(fv_out * fv_out, axis=-1, keepdims=True)
    inv_n = jax.lax.rsqrt(jnp.maximum(ss, L2_EPS * L2_EPS))    # == 1/max(||x||, eps)
    cl_ref[...] = jnp.sum(fv_out * scn_ref[...][None], axis=-1,
                          keepdims=True) * inv_n


# ----------------------------------------------------------------------------
# Parameter init (deterministic, mirrors the PyTorch __init__ choices)
# ----------------------------------------------------------------------------
def init_head_params(key, in_channels, num_classes):
    c, n = in_channels, num_classes
    ks = jax.random.split(key, 7)
    std = np.sqrt(2.0 / c)
    lin_bound = 1.0 / np.sqrt(c)
    w_cls = jax.random.normal(ks[0], (n, c, c), jnp.float32) * std        # per-class fc (out, in)
    b_cls = jax.random.uniform(ks[1], (n, c), jnp.float32, -lin_bound, lin_bound)
    # per-class BN (eval): [bias, gamma, beta, running_mean, running_var]
    p_cls = jnp.stack([b_cls,
                       jnp.ones((n, c), jnp.float32), jnp.zeros((n, c), jnp.float32),
                       jnp.zeros((n, c), jnp.float32), jnp.ones((n, c), jnp.float32)],
                      axis=1)                                             # (n, 5, c)
    u_w = jax.random.normal(ks[2], (c, c), jnp.float32) * std
    u_b = jax.random.uniform(ks[3], (c,), jnp.float32, -lin_bound, lin_bound)
    v_w = jax.random.normal(ks[4], (c, c), jnp.float32) * std
    v_b = jax.random.uniform(ks[5], (c,), jnp.float32, -lin_bound, lin_bound)
    bnv = jnp.stack([jnp.ones(n), jnp.zeros(n), jnp.zeros(n), jnp.ones(n)],
                    axis=1).astype(jnp.float32)                           # (n, 4) g,b,mean,var
    xav = np.sqrt(6.0 / (n + c))
    sc = jax.random.uniform(ks[6], (n, c), jnp.float32, -xav, xav)        # xavier_uniform_
    return dict(w_cls=w_cls, p_cls=p_cls, u_w=u_w, u_b=u_b,
                v_w=v_w, v_b=v_b, bnv=bnv, sc=sc)


# ----------------------------------------------------------------------------
# Host-side parameter preparation (BN folding, weight concatenation, casting)
# ----------------------------------------------------------------------------
def _fold_and_pack_params(params, compute_dtype):
    w_cls = params['w_cls']                                   # (n, C, C) torch (out, in)
    p = params['p_cls']                                       # (n, 5, C)
    bias, gamma, beta, mean, var = p[:, 0], p[:, 1], p[:, 2], p[:, 3], p[:, 4]
    scale = gamma * jax.lax.rsqrt(var + BN_EPS)               # (n, C) per output channel
    wt = jnp.transpose(w_cls, (0, 2, 1)) * scale[:, None, :]  # (n, C_in, C_out), BN folded
    bf = (bias - mean) * scale + beta                         # (n, C) folded bias
    n, c, _ = wt.shape
    # (C, n*C), class-major columns; streamed weights in the MXU compute dtype.
    wcat = jnp.transpose(wt, (1, 0, 2)).reshape(c, n * c).astype(compute_dtype)
    bcat = bf.reshape(1, n * c)                               # bias stays f32

    # GNN: merged [U | V] projection (pre-transposed to (in, out)).
    wuv = jnp.concatenate([params['u_w'].T, params['v_w'].T],
                          axis=1).astype(compute_dtype)                   # (C, 2C)
    buv = jnp.concatenate([params['u_b'], params['v_b']])[None, :]        # (1, 2C) f32

    # GNN BatchNorm1d(num_classes), eval mode, folded to per-node scale/shift.
    g2, b2, m2, v2 = (params['bnv'][:, 0], params['bnv'][:, 1],
                      params['bnv'][:, 2], params['bnv'][:, 3])
    s2 = g2 * jax.lax.rsqrt(v2 + BN_EPS)
    bn_scale = s2[:, None]                                                # (N, 1)
    bn_shift = (b2 - m2 * s2)[:, None]                                    # (N, 1)

    # sc: relu + L2 normalize once (parameter-only computation).
    scr = jnp.maximum(params['sc'], 0.0)
    sc_n = scr / jnp.maximum(jnp.linalg.norm(scr, axis=-1, keepdims=True), L2_EPS)

    return dict(wcat=wcat, bcat=bcat, wuv=wuv, buv=buv,
                bn_scale=bn_scale, bn_shift=bn_shift, sc_n=sc_n)


# ----------------------------------------------------------------------------
# Stage-1 tiling: classes-per-tile, weight-pipeline depth, and VMEM accounting
# ----------------------------------------------------------------------------
def _pick_class_block(n, c, batch, tokens, w_bytes, budget):
    """Pick classes-per-tile g (divisor of n), pipeline depth, and VMEM bytes.

    Accounts for ALL resident buffers (x2d, pool, bias, double-buffered
    output), not just the streamed weight tile, and sizes the pipeline depth
    against the same budget (fixes the Buffered(3) overshoot)."""
    resident = 2 * batch * tokens * c * w_bytes          # x2d block (x2 buffers)
    resident += 2 * batch * (batch * tokens) * 4         # pool block (f32, x2)

    def bytes_used(g, depth):
        return (resident
                + c * g * c * w_bytes * depth            # streamed weight tile
                + 2 * g * c * 4                          # bias tile (f32, x2)
                + 2 * batch * g * c * 4)                 # output tile (f32, x2)

    def aligned(g):
        return (g * c) % 128 == 0 or g == n

    divisors = [g for g in range(n, 0, -1) if n % g == 0 and aligned(g)]

    # v6e/v7x MXU is 2x256x256: prefer 256-lane-aligned tiles, then larger g.
    def pref(g):
        return (0 if ((g * c) % 256 == 0 or g == n) else 1, -g)

    # Prefer >= 2 grid steps so v7x's two TensorCores both get stage-1 work;
    # within that, take the largest tile that fits (short grid helps v5e/v6e).
    multi = sorted([g for g in divisors
                    if n // g >= 2 and bytes_used(g, 2) <= budget], key=pref)
    single = sorted([g for g in divisors if bytes_used(g, 2) <= budget], key=pref)
    if multi:
        g = multi[0]
    elif single:
        g = single[0]
    else:
        g = divisors[-1]        # smallest aligned tile; rely on vmem headroom

    # Deeper weight pipelining (hides DMA on the v5e weight-streaming regime)
    # only when the grid is long enough and the 3rd buffer fits the budget.
    depth = 3 if (n // g > 2 and bytes_used(g, 3) <= budget) else 2
    return g, depth, bytes_used(g, depth)


# ----------------------------------------------------------------------------
# Wrapper
# ----------------------------------------------------------------------------
def head_forward(x, params, neighbor_num=4, compute_dtype=jnp.bfloat16):
    """Head forward.  compute_dtype selects the MXU operand dtype for the two
    big matmuls (bf16 = performance path, f32 accumulation either way)."""
    B, L, C = x.shape
    n = params['w_cls'].shape[0]
    prep = _fold_and_pack_params(params, compute_dtype)

    # Flatten tokens in the wrapper (free on the HBM array) and build the
    # mean-pooling matrix so the token-mean is a small MXU matmul (f32).
    x2d = x.reshape(B * L, C).astype(compute_dtype)
    pool = ((jnp.arange(B * L)[None, :] // L) ==
            jnp.arange(B)[:, None]).astype(jnp.float32) / float(L)        # (B, B*L)

    # ---- generation-aware VMEM budgeting (64 MiB v7x vs 128 MiB v5e/v6e)
    try:
        vmem_cap = int(pltpu.get_tpu_info().vmem_capacity_bytes)
    except Exception:
        vmem_cap = 64 * 1024 * 1024
    budget = (vmem_cap * 3) // 4                     # headroom for compiler scratch

    w_bytes = jnp.dtype(compute_dtype).itemsize
    g, depth, vmem_used = _pick_class_block(n, C, B, L, w_bytes, budget)
    num_tiles = n // g
    w_spec_kwargs = {}
    if depth > 2:
        w_spec_kwargs["pipeline_mode"] = pl.Buffered(depth)
    vmem_limit = int(max(min(budget, vmem_used + (8 << 20)), 16 << 20))

    # ---- stage 1: fused class LinearBlocks + token mean (lane-dense output)
    fv_flat = pl.pallas_call(
        class_linear_kernel,
        grid=(num_tiles,),
        in_specs=[pl.BlockSpec((B * L, C), lambda i: (0, 0)),
                  pl.BlockSpec((B, B * L), lambda i: (0, 0)),
                  pl.BlockSpec((C, g * C), lambda i: (0, i), **w_spec_kwargs),
                  pl.BlockSpec((1, g * C), lambda i: (0, i))],
        out_specs=pl.BlockSpec((B, g * C), lambda i: (0, i)),
        out_shape=jax.ShapeDtypeStruct((B, n * C), jnp.float32),
        compiler_params=pltpu.CompilerParams(
            dimension_semantics=("parallel",),
            vmem_limit_bytes=vmem_limit),
    )(x2d, pool, prep['wcat'], prep['bcat'])

    # (B, n*C) -> (B, n, C) is free on the HBM array (no transpose needed).
    f_v = fv_flat.reshape(B, n, C)

    # ---- stage 2: GNN + cosine head, batch-parallel (2 tiles -> 2 TCs on v7x)
    B_tiles = 2 if (B >= 2 and B % 2 == 0) else 1
    Bb = B // B_tiles
    kern = functools.partial(gnn_head_kernel, neighbor_num=neighbor_num)
    fv_out, cl3 = pl.pallas_call(
        kern,
        grid=(B_tiles,),
        in_specs=[pl.BlockSpec((Bb, n, C), lambda i: (i, 0, 0)),
                  pl.BlockSpec((C, 2 * C), lambda i: (0, 0)),
                  pl.BlockSpec((1, 2 * C), lambda i: (0, 0)),
                  pl.BlockSpec((n, 1), lambda i: (0, 0)),
                  pl.BlockSpec((n, 1), lambda i: (0, 0)),
                  pl.BlockSpec((n, C), lambda i: (0, 0))],
        out_specs=(pl.BlockSpec((Bb, n, C), lambda i: (i, 0, 0)),
                   pl.BlockSpec((Bb, n, 1), lambda i: (i, 0, 0))),
        out_shape=(jax.ShapeDtypeStruct((B, n, C), jnp.float32),
                   jax.ShapeDtypeStruct((B, n, 1), jnp.float32)),
        compiler_params=pltpu.CompilerParams(
            dimension_semantics=("parallel",)),
    )(f_v, prep['wuv'], prep['buv'], prep['bn_scale'], prep['bn_shift'],
      prep['sc_n'])
    cl = cl3.reshape(B, n)
    return cl, fv_out


# ----------------------------------------------------------------------------
# Pure-JAX reference (mirrors PyTorch eval-mode forward, unfolded params)
# ----------------------------------------------------------------------------
def head_reference(x, params, neighbor_num=4):
    hp = jax.lax.Precision.HIGHEST
    p = params['p_cls']
    y = jnp.einsum('blc,ndc->nbld', x, params['w_cls'], precision=hp) \
        + p[:, 0][:, None, None, :]
    y = (y - p[:, 3][:, None, None, :]) / jnp.sqrt(p[:, 4][:, None, None, :] + BN_EPS) \
        * p[:, 1][:, None, None, :] + p[:, 2][:, None, None, :]
    y = jnp.maximum(y, 0.0)
    f_v = jnp.transpose(jnp.mean(y, axis=2), (1, 0, 2))     # (B, n, C)

    si = jnp.einsum('bic,bjc->bij', f_v, f_v, precision=hp)
    thr = -jnp.sort(-si, axis=-1)[..., neighbor_num - 1:neighbor_num]
    adj = (si >= thr).astype(jnp.float32)
    deg = adj.sum(-1)
    dinv = deg ** -0.5
    A = dinv[:, :, None] * adj * dinv[:, None, :]
    vx = jnp.einsum('bnc,dc->bnd', f_v, params['v_w'], precision=hp) + params['v_b']
    ux = jnp.einsum('bnc,dc->bnd', f_v, params['u_w'], precision=hp) + params['u_b']
    z = jnp.einsum('bij,bjc->bic', A, vx, precision=hp) + ux
    g, bt, rm, rv = [params['bnv'][:, i][None, :, None] for i in range(4)]
    z = (z - rm) / jnp.sqrt(rv + BN_EPS) * g + bt
    fv_out = jnp.maximum(f_v + z, 0.0)

    sc = jnp.maximum(params['sc'], 0.0)
    sc = sc / jnp.maximum(jnp.linalg.norm(sc, axis=-1, keepdims=True), L2_EPS)
    cln = fv_out / jnp.maximum(jnp.linalg.norm(fv_out, axis=-1, keepdims=True), L2_EPS)
    cl = jnp.sum(cln * sc[None], axis=-1)
    return cl, fv_out


if __name__ == "__main__":
    B, L, C, N_CLS, K = 2, 8, 32, 8, 4      # batch, tokens, in_channels, num_classes, neighbor_num
    key = jax.random.PRNGKey(0)
    kx, kp = jax.random.split(key)
    x = jax.random.normal(kx, (B, L, C), jnp.float32)
    params = init_head_params(kp, C, N_CLS)

    # Strict numerical check: f32 compute path vs HIGHEST-precision reference.
    cl32, fv32 = jax.block_until_ready(
        head_forward(x, params, neighbor_num=K, compute_dtype=jnp.float32))
    cl_ref, fv_ref = head_reference(x, params, neighbor_num=K)
    np.testing.assert_allclose(np.asarray(cl32), np.asarray(cl_ref), rtol=1e-3, atol=1e-3)
    np.testing.assert_allclose(np.asarray(fv32), np.asarray(fv_ref), rtol=1e-3, atol=1e-3)

    # Performance path: bf16 MXU operands (f32 accumulation).  Not held to the
    # f32 1e-3 tolerance — bf16 rounding can legitimately flip near-tie top-k
    # adjacency bits — so only shape/finiteness are asserted here.
    cl16, fv16 = jax.block_until_ready(
        head_forward(x, params, neighbor_num=K, compute_dtype=jnp.bfloat16))
    assert cl16.shape == cl_ref.shape and fv16.shape == fv_ref.shape
    assert bool(jnp.all(jnp.isfinite(cl16))) and bool(jnp.all(jnp.isfinite(fv16)))
    print("KERNEL_OK")
</pallas_src>

<mosaic_0001>
module attributes {stable_mosaic.version = 11 : i64} {
  func.func @class_linear_kernel(%arg0: i32, %arg1: memref<16x32xf32, #tpu.memory_space<vmem>>, %arg2: memref<2x16xf32, #tpu.memory_space<vmem>>, %arg3: memref<32x128xf32, #tpu.memory_space<vmem>>, %arg4: memref<1x128xf32, #tpu.memory_space<vmem>>, %arg5: memref<2x128xf32, #tpu.memory_space<vmem>>) attributes {dimension_semantics = [#tpu.dimension_semantics<parallel>], iteration_bounds = array<i64: 2>, scalar_prefetch = 0 : i64, scratch_operands = 0 : i64, tpu.core_type = #tpu.core_type<tc>, window_params = [{pipeline_mode = #tpu.pipeline_mode<synchronous>, transform_indices = @transform_0, window_bounds = array<i64: 16, 32>}, {pipeline_mode = #tpu.pipeline_mode<synchronous>, transform_indices = @transform_1, window_bounds = array<i64: 2, 16>}, {transform_indices = @transform_2, window_bounds = array<i64: 32, 128>}, {transform_indices = @transform_3, window_bounds = array<i64: 1, 128>}, {transform_indices = @transform_4, window_bounds = array<i64: 2, 128>}]} {
    %c0 = arith.constant 0 : index
    %c0_0 = arith.constant 0 : index
    %0 = vector.load %arg1[%c0, %c0_0] : memref<16x32xf32, #tpu.memory_space<vmem>>, vector<16x32xf32>
    %c0_1 = arith.constant 0 : index
    %c0_2 = arith.constant 0 : index
    %1 = vector.load %arg3[%c0_1, %c0_2] : memref<32x128xf32, #tpu.memory_space<vmem>>, vector<32x128xf32>
    %cst = arith.constant dense<0.000000e+00> : vector<16x128xf32>
    %2 = tpu.matmul %0, %1, %cst {dimension_numbers = #tpu.dot_dimension_numbers<[1], [0], [0], [1], [0, 0, 1, 1], [], []>} : vector<16x32xf32>, vector<32x128xf32>, vector<16x128xf32> -> vector<16x128xf32>
    %c0_3 = arith.constant 0 : index
    %c0_4 = arith.constant 0 : index
    %3 = vector.load %arg4[%c0_3, %c0_4] : memref<1x128xf32, #tpu.memory_space<vmem>>, vector<1x128xf32>
    %4 = vector.broadcast %3 : vector<1x128xf32> to vector<16x128xf32>
    %5 = arith.addf %2, %4 : vector<16x128xf32>
    %cst_5 = arith.constant 0.000000e+00 : f32
    %6 = vector.broadcast %cst_5 : f32 to vector<16x128xf32>
    %7 = arith.maximumf %5, %6 : vector<16x128xf32>
    %c0_6 = arith.constant 0 : index
    %c0_7 = arith.constant 0 : index
    %8 = vector.load %arg2[%c0_6, %c0_7] : memref<2x16xf32, #tpu.memory_space<vmem>>, vector<2x16xf32>
    %cst_8 = arith.constant dense<0.000000e+00> : vector<2x128xf32>
    %9 = tpu.matmul %8, %7, %cst_8 {dimension_numbers = #tpu.dot_dimension_numbers<[1], [0], [0], [1], [0, 0, 1, 1], [], []>} : vector<2x16xf32>, vector<16x128xf32>, vector<2x128xf32> -> vector<2x128xf32>
    %c0_9 = arith.constant 0 : index
    %c0_10 = arith.constant 0 : index
    %10 = vector.load %arg5[%c0_9, %c0_10] : memref<2x128xf32, #tpu.memory_space<vmem>>, vector<2x128xf32>
    tpu.vector_store %arg5[%c0_9, %c0_10], %9 {strides = array<i32>} : memref<2x128xf32, #tpu.memory_space<vmem>>, vector<2x128xf32>,
    return
  }
  func.func @transform_0(%arg0: i32) -> (i32, i32) {
    %c0_i32 = arith.constant 0 : i32
    %c0_i32_0 = arith.constant 0 : i32
    %c0_i32_1 = arith.constant 0 : i32
    return %c0_i32, %c0_i32_0 : i32, i32
  }
  func.func @transform_1(%arg0: i32) -> (i32, i32) {
    %c0_i32 = arith.constant 0 : i32
    %c0_i32_0 = arith.constant 0 : i32
    %c0_i32_1 = arith.constant 0 : i32
    return %c0_i32, %c0_i32_0 : i32, i32
  }
  func.func @transform_2(%arg0: i32) -> (i32, i32) {
    %c0_i32 = arith.constant 0 : i32
    %c0_i32_0 = arith.constant 0 : i32
    return %c0_i32, %arg0 : i32, i32
  }
  func.func @transform_3(%arg0: i32) -> (i32, i32) {
    %c0_i32 = arith.constant 0 : i32
    %c0_i32_0 = arith.constant 0 : i32
    return %c0_i32, %arg0 : i32, i32
  }
  func.func @transform_4(%arg0: i32) -> (i32, i32) {
    %c0_i32 = arith.constant 0 : i32
    %c0_i32_0 = arith.constant 0 : i32
    return %c0_i32, %arg0 : i32, i32
  }
}

</mosaic_0001>

<llo_original>
// kernel: tpu_custom_call.1
$region0: #{tpu_custom_call.1}
  #allocation0 [shape = 'u32[]', space=smem, size = 0x4, offset = 0x4, fixed_abs, tag = 'smem constant byte address 0x4 - core index']
  #allocation1 [shape = 'u32[144,128]{1,0:T(1,128)}', space=vmem, size = 0x12000, scoped, tag = 'internal scratch']
  %s0 = inlined_call_operand.hbm [shape: f32[16,32], index: 0, kind: input, shape index: {}]
  %s1 = inlined_call_operand.hbm [shape: f32[2,16], index: 1, kind: input, shape index: {}]
  %s2 = inlined_call_operand.hbm [shape: f32[32,256], index: 2, kind: input, shape index: {}]
  %s3 = inlined_call_operand.vmem [shape: f32[1,256], index: 3, kind: input, shape index: {}]
  %s4 = inlined_call_operand.hbm [shape: f32[2,256], index: 4, kind: output, shape index: {}]
  %s5 = sld [smem:[#allocation0]]
  $region61: #{tpu_custom_call.1} parent=0
    _
  %s7 = ssub.s32 1, %s5
  %s8 = scalar_select 0, %s7, %s5
  $region1: #{tpu_custom_call.1} parent=0
    #allocation2 [shape = 'u8[8192]{0}', space=vmem, size = 0x2000, scoped, tag = 'input window, operand 0, single buffered']
    #allocation3 [shape = 's32[2]{0}', space=sflag, size = 0x8, scoped, tag = 'scoped memory for tpu_custom_call.1']
    #allocation4 [shape = 's32[2]{0}', space=sflag, size = 0x8, scoped, tag = 'scoped memory for tpu_custom_call.1']
    #allocation5 [shape = 'u8[1024]{0}', space=vmem, size = 0x400, scoped, tag = 'input window, operand 1, single buffered']
    #allocation6 [shape = 's32[1]{0}', space=sflag, size = 0x4, scoped, tag = 'scoped memory for tpu_custom_call.1']
    #allocation7 [shape = 'u8[32768]{0}', space=vmem, size = 0x8000, scoped, tag = 'input window, operand 2']
    #allocation8 [shape = 'u8[2048]{0}', space=vmem, size = 0x800, scoped, tag = 'output window, operand 0']
    %9 = vsyncpa [#allocation3], 0
    %10 = vsyncpa [#allocation6], 0
    %11 = vsyncpa [#allocation4], 0
    %s12 = scalar_lea.sflag [#allocation4], 1
    %13 = vsyncpa %s12, 0
    loop: start=0, step=1, limit=4
    $region2: #{tpu_custom_call.1} parent=1 // loop_pre_header
      _
    $region3: #{tpu_custom_call.1} parent=1 // loop_header
      %s15 = sphi 0, %s19
      %p16 = scmp.ge.s32.totalorder %s15, 4
      %s23 = sphi 0, %s23
      %s25 = sphi 0, %s23
      %s26 = sphi 0, %s25
      %s40 = sphi 0, %s26
      %s44 = sphi 0, %s44
      %s46 = sphi 0, %s44
      %s47 = sphi 0, %s46
      %s61 = sphi 0, %s47
      %s67 = sphi 0, %s69
      %s70 = sphi 0, %s67
      %s71 = sphi 0, %s70
      %s87 = sphi 0, %s71
      %s93 = sphi 0, %s95
      %s96 = sphi 0, %s93
      %s97 = sphi 0, %s96
      %s113 = sphi 0, %s97
      %s119 = sphi 0, %s121
      %s122 = sphi 0, %s119
      %s123 = sphi 0, %s122
      %s139 = sphi 0, %s123
    $region4: #{tpu_custom_call.1} parent=1 // loop_header_branch
      %18 = sbr.rel (%p16) target = $region8
    $region5: #{tpu_custom_call.1} parent=1 // loop_body
      %s20 = ssub.s32 %s15, 1
      %s21 = ssub.s32 %s15, 2
      %s22 = sadd.s32 %s15, 1
      %s24 = sadd.s32 %s23, 1
      %p27 = scmp.eq.s32.totalorder %s15, 1
      %p28 = scmp.ne.s32.totalorder %s23, %s25
      %p29 = scmp.eq.s32.totalorder %s15, 0
      %p30 = por %p28, %p29
      %p31 = scmp.ne.s32.totalorder %s23, %s25
      %p32 = scmp.eq.s32.totalorder %s20, 1
      %p33 = por %p31, %p32
      %p34 = scmp.ne.s32.totalorder %s25, %s26
      %p35 = scmp.eq.s32.totalorder %s20, 0
      %p36 = por %p34, %p35
      %p37 = scmp.ne.s32.totalorder %s25, %s26
      %p38 = scmp.eq.s32.totalorder %s21, 1
      %p39 = por %p37, %p38
      %p41 = scmp.ne.s32.totalorder %s26, %s40
      %p42 = scmp.eq.s32.totalorder %s21, 0
      %p43 = por %p41, %p42
      %s45 = sadd.s32 %s44, 1
      %p48 = scmp.eq.s32.totalorder %s15, 1
      %p49 = scmp.ne.s32.totalorder %s44, %s46
      %p50 = scmp.eq.s32.totalorder %s15, 0
      %p51 = por %p49, %p50
      %p52 = scmp.ne.s32.totalorder %s44, %s46
      %p53 = scmp.eq.s32.totalorder %s20, 1
      %p54 = por %p52, %p53
      %p55 = scmp.ne.s32.totalorder %s46, %s47
      %p56 = scmp.eq.s32.totalorder %s20, 0
      %p57 = por %p55, %p56
      %p58 = scmp.ne.s32.totalorder %s46, %s47
      %p59 = scmp.eq.s32.totalorder %s21, 1
      %p60 = por %p58, %p59
      %p62 = scmp.ne.s32.totalorder %s47, %s61
      %p63 = scmp.eq.s32.totalorder %s21, 0
      %p64 = por %p62, %p63
      %s65 = ssub.s32 %s15, %s22
      %p66 = scmp.eq.s32.totalorder %s65, 0
      %s68 = sadd.s32 %s67, 1
      %s69 = scalar_select %p66, %s67, %s68
      %p72 = pneg %p66
      %p73 = scmp.eq.s32.totalorder %s15, 1
      %p74 = por %p72, %p73
      %p75 = scmp.ne.s32.totalorder %s67, %s70
      %p76 = scmp.eq.s32.totalorder %s15, 0
      %p77 = por %p75, %p76
      %p78 = scmp.ne.s32.totalorder %s67, %s70
      %p79 = scmp.eq.s32.totalorder %s20, 1
      %p80 = por %p78, %p79
      %p81 = scmp.ne.s32.totalorder %s70, %s71
      %p82 = scmp.eq.s32.totalorder %s20, 0
      %p83 = por %p81, %p82
      %p84 = scmp.ne.s32.totalorder %s70, %s71
      %p85 = scmp.eq.s32.totalorder %s21, 1
      %p86 = por %p84, %p85
      %p88 = scmp.ne.s32.totalorder %s71, %s87
      %p89 = scmp.eq.s32.totalorder %s21, 0
      %p90 = por %p88, %p89
      %s91 = ssub.s32 %s15, %s22
      %p92 = scmp.eq.s32.totalorder %s91, 0
      %s94 = sadd.s32 %s93, 1
      %s95 = scalar_select %p92, %s93, %s94
      %p98 = pneg %p92
      %p99 = scmp.eq.s32.totalorder %s15, 1
      %p100 = por %p98, %p99
      %p101 = scmp.ne.s32.totalorder %s93, %s96
      %p102 = scmp.eq.s32.totalorder %s15, 0
      %p103 = por %p101, %p102
      %p104 = scmp.ne.s32.totalorder %s93, %s96
      %p105 = scmp.eq.s32.totalorder %s20, 1
      %p106 = por %p104, %p105
      %p107 = scmp.ne.s32.totalorder %s96, %s97
      %p108 = scmp.eq.s32.totalorder %s20, 0
      %p109 = por %p107, %p108
      %p110 = scmp.ne.s32.totalorder %s96, %s97
      %p111 = scmp.eq.s32.totalorder %s21, 1
      %p112 = por %p110, %p111
      %p114 = scmp.ne.s32.totalorder %s97, %s113
      %p115 = scmp.eq.s32.totalorder %s21, 0
      %p116 = por %p114, %p115
      %s117 = ssub.s32 %s15, %s22
      %p118 = scmp.eq.s32.totalorder %s117, 0
      %s120 = sadd.s32 %s119, 1
      %s121 = scalar_select %p118, %s119, %s120
      %p124 = pneg %p118
      %p125 = scmp.eq.s32.totalorder %s15, 1
      %p126 = por %p124, %p125
      %p127 = scmp.ne.s32.totalorder %s119, %s122
      %p128 = scmp.eq.s32.totalorder %s15, 0
      %p129 = por %p127, %p128
      %p130 = scmp.ne.s32.totalorder %s119, %s122
      %p131 = scmp.eq.s32.totalorder %s20, 1
      %p132 = por %p130, %p131
      %p133 = scmp.ne.s32.totalorder %s122, %s123
      %p134 = scmp.eq.s32.totalorder %s20, 0
      %p135 = por %p133, %p134
      %p136 = scmp.ne.s32.totalorder %s122, %s123
      %p137 = scmp.eq.s32.totalorder %s21, 1
      %p138 = por %p136, %p137
      %p140 = scmp.ne.s32.totalorder %s123, %s139
      %p141 = scmp.eq.s32.totalorder %s21, 0
      %p142 = por %p140, %p141
      %p143 = scmp.le.s32.totalorder 1, %s15
      %p144 = scmp.lt.s32.totalorder %s15, 3
      %p145 = pnand %p143, %p144
      %p146 = pneg %p145
      // Predicated region
      $region9: #{tpu_custom_call.1} parent=5 // pred_check
        _
      $region10: #{tpu_custom_call.1} parent=5 // pred_check_branch
        %148 = sbr.rel (%p145) target = $region12
      $region11: #{tpu_custom_call.1} parent=5 // pred_region
        %s149 = ssub.s32 %s15, 1
        // Predicated region
        $region13: #{tpu_custom_call.1} parent=11 // pred_check
          %p150 = pneg %p36
        $region14: #{tpu_custom_call.1} parent=11 // pred_check_branch
          %152 = sbr.rel (%p150) target = $region16
        $region15: #{tpu_custom_call.1} parent=11 // pred_region
          %s154 = ssub.s32 256, 256
          %155 = vsyncadd [#allocation3], %s154
          %s156 = sshll.u32 [#allocation2], 4
          %s157 = int_to_ptr.vmem [resolvable:$true] %s156
          %162 = dma.hbm_to_vmem [thread:$0]  %s0, 256, %s157, [#allocation3], 128, 128, 8
        $region16: #{tpu_custom_call.1} parent=11 // pred_fallthru
          _
        // Predicated region
        $region17: #{tpu_custom_call.1} parent=11 // pred_check
          %p163 = pneg %p57
        $region18: #{tpu_custom_call.1} parent=11 // pred_check_branch
          %165 = sbr.rel (%p163) target = $region20
        $region19: #{tpu_custom_call.1} parent=11 // pred_region
          %s167 = ssub.s32 32, 32
          %168 = vsyncadd [#allocation6], %s167
          %s170 = sshll.u32 [#allocation5], 4
          %s171 = int_to_ptr.vmem [resolvable:$true] %s170
          %173 = dma.hbm_to_vmem [thread:$0]  %s1, 32, %s171, [#allocation6]
        $region20: #{tpu_custom_call.1} parent=11 // pred_fallthru
          _
      $region12: #{tpu_custom_call.1} parent=5 // pred_fallthru
        _
      %p174 = scmp.lt.s32.totalorder %s15, 2
      // Predicated region
      $region21: #{tpu_custom_call.1} parent=5 // pred_check
        %p175 = pneg %p174
      $region22: #{tpu_custom_call.1} parent=5 // pred_check_branch
        %177 = sbr.rel (%p175) target = $region24
      $region23: #{tpu_custom_call.1} parent=5 // pred_region
        // Predicated region
        $region25: #{tpu_custom_call.1} parent=23 // pred_check
          %p178 = pneg %p77
        $region26: #{tpu_custom_call.1} parent=23 // pred_check_branch
          %180 = sbr.rel (%p178) target = $region28
        $region27: #{tpu_custom_call.1} parent=23 // pred_region
          %s181 = sand.u32 %s15, 1
          %s182 = scalar_lea.sflag [#allocation3], %s181
          %s183 = sand.u32 %s67, 1
          %s184 = smul.addr %s183, 32
          %s185 = scalar_lea.vmem [#allocation7], %s184
          %s187 = ssub.s32 512, 512
          %188 = vsyncadd %s182, %s187
          %s189 = smul.addr %s15, 128
          %s190 = scalar_lea.hbm %s2, %s189
          %s191 = sshll.u32 %s185, 4
          %s192 = int_to_ptr.vmem [resolvable:$true] %s191
          %197 = dma.hbm_to_vmem [thread:$0]  %s190, 512, %s192, %s182, 256, 128, 8
        $region28: #{tpu_custom_call.1} parent=23 // pred_fallthru
          _
        // Predicated region
        $region29: #{tpu_custom_call.1} parent=23 // pred_check
          %p198 = pneg %p103
        $region30: #{tpu_custom_call.1} parent=23 // pred_check_branch
          %200 = sbr.rel (%p198) target = $region32
        $region31: #{tpu_custom_call.1} parent=23 // pred_region
          %p201 = scmp.lt.s32.totalorder %s15, 1
          %s202 = scalar_select %p201, %s15, 1
          %s203 = scalar_lea.vmem %s3, %s202
        $region32: #{tpu_custom_call.1} parent=23 // pred_fallthru
          _
      $region24: #{tpu_custom_call.1} parent=5 // pred_fallthru
        _
      %p204 = scmp.le.s32.totalorder 1, %s15
      %p205 = scmp.lt.s32.totalorder %s15, 3
      %p206 = pnand %p204, %p205
      %p207 = pneg %p206
      // Predicated region
      $region33: #{tpu_custom_call.1} parent=5 // pred_check
        _
      $region34: #{tpu_custom_call.1} parent=5 // pred_check_branch
        %209 = sbr.rel (%p206) target = $region36
      $region35: #{tpu_custom_call.1} parent=5 // pred_region
        %s210 = ssub.s32 %s15, 1
        // Predicated region
        $region37: #{tpu_custom_call.1} parent=35 // pred_check
          %p211 = pneg %p36
        $region38: #{tpu_custom_call.1} parent=35 // pred_check_branch
          %213 = sbr.rel (%p211) target = $region40
        $region39: #{tpu_custom_call.1} parent=35 // pred_region
          %214 = dma.done [#allocation3], 256
        $region40: #{tpu_custom_call.1} parent=35 // pred_fallthru
          _
        // Predicated region
        $region41: #{tpu_custom_call.1} parent=35 // pred_check
          %p215 = pneg %p57
        $region42: #{tpu_custom_call.1} parent=35 // pred_check_branch
          %217 = sbr.rel (%p215) target = $region44
        $region43: #{tpu_custom_call.1} parent=35 // pred_region
          %218 = dma.done [#allocation6], 32
        $region44: #{tpu_custom_call.1} parent=35 // pred_fallthru
          _
        %s219 = sand.u32 %s20, 1
        %s220 = scalar_lea.sflag [#allocation3], %s219
        %s221 = sand.u32 %s70, 1
        %s222 = smul.addr %s221, 32
        %s223 = scalar_lea.vmem [#allocation7], %s222
        // Predicated region
        $region45: #{tpu_custom_call.1} parent=35 // pred_check
          %p224 = pneg %p83
        $region46: #{tpu_custom_call.1} parent=35 // pred_check_branch
          %226 = sbr.rel (%p224) target = $region48
        $region47: #{tpu_custom_call.1} parent=35 // pred_region
          %227 = dma.done %s220, 512
        $region48: #{tpu_custom_call.1} parent=35 // pred_fallthru
          _
        %p228 = pneg %p36
        %p229 = pneg %p33
        %p230 = pneg %p57
        %p231 = pneg %p54
        %s232 = sand.u32 %s20, 1
        %s233 = scalar_lea.sflag [#allocation3], %s232
        %s234 = sand.u32 %s70, 1
        %s235 = smul.addr %s234, 32
        %s236 = scalar_lea.vmem [#allocation7], %s235
        %p237 = pneg %p83
        %p238 = pneg %p80
        %p239 = scmp.lt.s32.totalorder %s20, 1
        %s240 = scalar_select %p239, %s20, 1
        %s241 = scalar_lea.vmem %s3, %s240
        %p242 = pneg %p109
        %p243 = pneg %p106
        %p244 = pneg %p135
        %p245 = pneg %p132
        %s246 = sand.u32 %s122, 1
        %s247 = scalar_lea.sflag [#allocation4], %s246
        %s248 = sand.u32 %s122, 1
        %s249 = smul.addr %s248, 2
        %s250 = scalar_lea.vmem [#allocation8], %s249
        %p251 = scmp.lt.s32.totalorder %s20, 1
        %s252 = scalar_select %p251, %s20, 1
        %s253 = scalar_lea.vmem %s3, %s252
        %v254 = vld [vmem:[#allocation2] sm:$0xff]
        %v255 = vld [vmem:[#allocation2 + $0x8] sm:$0xff]
        %v256 = vld [vmem:[%s223] sm:$0xff]
        %v257 = vld [vmem:[%s223 + $0x8] sm:$0xff]
        %v258 = vld [vmem:[%s223 + $0x10] sm:$0xff]
        %v259 = vld [vmem:[%s223 + $0x18] sm:$0xff]
        %v260 = vld [vmem:[%s253] sm:$0x1]
        %v262 = vlaneseq
        %v263 = vshrl.u32 %v262, 7
        %v264 = vsub.s32 0, %v263
        %v265 = vrot.slane %v260, %v264
        %vm267 = vcmask 261120
        %v269 = vsel %vm267, %v254, 0
        %v272 = vsel %vm267, %v255, 0
        %274 = vmatprep.subr.mxu0 0.0
        %275 = vmatpush1.msra.mxu0 0.0
        %276 = vmatprep.subr.mxu0 0.0
        %277 = vmatpush1.msra.mxu0 0.0
        %278 = vmatprep.subr.mxu0 0.0
        %279 = vmatpush1.msra.mxu0 0.0
        %280 = vmatprep.subr.mxu0 0.0
        %281 = vmatpush1.msra.mxu0 0.0
        %282 = vmatprep.subr.mxu0 0.0
        %283 = vmatpush1.msra.mxu0 0.0
        %284 = vmatprep.subr.mxu0 0.0
        %285 = vmatpush1.msra.mxu0 0.0
        %286 = vmatprep.subr.mxu0 0.0
        %287 = vmatpush1.msra.mxu0 0.0
        %288 = vmatprep.subr.mxu0 0.0
        %289 = vmatpush1.msra.mxu0 0.0
        %290 = vmatprep.subr.mxu0 0.0
        %291 = vmatpush1.msra.mxu0 0.0
        %292 = vmatprep.subr.mxu0 0.0
        %293 = vmatpush1.msra.mxu0 0.0
        %294 = vmatprep.subr.mxu0 0.0
        %295 = vmatpush1.msra.mxu0 0.0
        %296 = vmatprep.subr.mxu0 0.0
        %297 = vmatpush1.msra.mxu0 0.0
        %298 = vmatprep.subr.mxu0 0.0
        %299 = vmatpush1.msra.mxu0 %v259
        %300 = vmatprep.subr.mxu0 0.0
        %301 = vmatpush1.msra.mxu0 %v258
        %302 = vmatprep.subr.mxu0 0.0
        %303 = vmatpush1.msra.mxu0 %v257
        %304 = vmatprep.subr.mxu0 0.0
        %305 = vmatpush1.msra.mxu0 %v256
        %306 = vmatprep.subr.mxu0 0.0
        %307 = vmatpush2.msra.mxu0 0.0
        %308 = vmatprep.subr.mxu0 0.0
        %309 = vmatpush2.msra.mxu0 0.0
        %310 = vmatprep.subr.mxu0 0.0
        %311 = vmatpush2.msra.mxu0 0.0
        %312 = vmatprep.subr.mxu0 0.0
        %313 = vmatpush2.msra.mxu0 0.0
        %314 = vmatprep.subr.mxu0 0.0
        %315 = vmatpush2.msra.mxu0 0.0
        %316 = vmatprep.subr.mxu0 0.0
        %317 = vmatpush2.msra.mxu0 0.0
        %318 = vmatprep.subr.mxu0 0.0
        %319 = vmatpush2.msra.mxu0 0.0
        %320 = vmatprep.subr.mxu0 0.0
        %321 = vmatpush2.msra.mxu0 0.0
        %322 = vmatprep.subr.mxu0 0.0
        %323 = vmatpush2.msra.mxu0 0.0
        %324 = vmatprep.subr.mxu0 0.0
        %325 = vmatpush2.msra.mxu0 0.0
        %326 = vmatprep.subr.mxu0 0.0
        %327 = vmatpush2.msra.mxu0 0.0
        %328 = vmatprep.subr.mxu0 0.0
        %329 = vmatpush2.msra.mxu0 0.0
        %330 = vmatprep.subr.mxu0 0.0
        %331 = vmatpush2.msra.mxu0 0.0
        %332 = vmatprep.subr.mxu0 0.0
        %333 = vmatpush2.msra.mxu0 0.0
        %334 = vmatprep.subr.mxu0 0.0
        %335 = vmatpush2.msra.mxu0 0.0
        %336 = vmatprep.subr.mxu0 0.0
        %337 = vmatpush2.msra.mxu0 0.0
        %338 = vmatprep.mubr.f32.mxu0 0.0
        %339 = vmatmul.mubr.f32.gmra.mxu0 %v269
        %v340 = vpop.f32.mrf.mxu0
        %v341 = vadd.f32 %v265, %v340
        %v342 = vpop.f32.mrf.mxu0
        %343 = vmatprep.mubr.f32.mxu0 0.0
        %344 = vmatmul.mubr.f32.gmra.mxu0 %v272
        %v345 = vpop.f32.mrf.mxu0
        %v346 = vadd.f32 %v265, %v345
        %v347 = vpop.f32.mrf.mxu0
        %348 = vdwg.mxu0
        %v349 = vmax.f32 %v341, 0.0
        %v350 = vmax.f32 %v346, 0.0
        %v351 = vld [vmem:[#allocation5] sm:$0x3]
        %vm352 = vcmask 130048
        %v354 = vsel %vm352, %v351, 0
        %356 = vmatprep.subr.mxu0 0.0
        %357 = vmatpush1.msra.mxu0 0.0
        %358 = vmatprep.subr.mxu0 0.0
        %359 = vmatpush1.msra.mxu0 0.0
        %360 = vmatprep.subr.mxu0 0.0
        %361 = vmatpush1.msra.mxu0 0.0
        %362 = vmatprep.subr.mxu0 0.0
        %363 = vmatpush1.msra.mxu0 0.0
        %364 = vmatprep.subr.mxu0 0.0
        %365 = vmatpush1.msra.mxu0 0.0
        %366 = vmatprep.subr.mxu0 0.0
        %367 = vmatpush1.msra.mxu0 0.0
        %368 = vmatprep.subr.mxu0 0.0
        %369 = vmatpush1.msra.mxu0 0.0
        %370 = vmatprep.subr.mxu0 0.0
        %371 = vmatpush1.msra.mxu0 0.0
        %372 = vmatprep.subr.mxu0 0.0
        %373 = vmatpush1.msra.mxu0 0.0
        %374 = vmatprep.subr.mxu0 0.0
        %375 = vmatpush1.msra.mxu0 0.0
        %376 = vmatprep.subr.mxu0 0.0
        %377 = vmatpush1.msra.mxu0 0.0
        %378 = vmatprep.subr.mxu0 0.0
        %379 = vmatpush1.msra.mxu0 0.0
        %380 = vmatprep.subr.mxu0 0.0
        %381 = vmatpush1.msra.mxu0 0.0
        %382 = vmatprep.subr.mxu0 0.0
        %383 = vmatpush1.msra.mxu0 0.0
        %384 = vmatprep.subr.mxu0 0.0
        %385 = vmatpush1.msra.mxu0 %v350
        %386 = vmatprep.subr.mxu0 0.0
        %387 = vmatpush1.msra.mxu0 %v349
        %388 = vmatprep.subr.mxu0 0.0
        %389 = vmatpush2.msra.mxu0 0.0
        %390 = vmatprep.subr.mxu0 0.0
        %391 = vmatpush2.msra.mxu0 0.0
        %392 = vmatprep.subr.mxu0 0.0
        %393 = vmatpush2.msra.mxu0 0.0
        %394 = vmatprep.subr.mxu0 0.0
        %395 = vmatpush2.msra.mxu0 0.0
        %396 = vmatprep.subr.mxu0 0.0
        %397 = vmatpush2.msra.mxu0 0.0
        %398 = vmatprep.subr.mxu0 0.0
        %399 = vmatpush2.msra.mxu0 0.0
        %400 = vmatprep.subr.mxu0 0.0
        %401 = vmatpush2.msra.mxu0 0.0
        %402 = vmatprep.subr.mxu0 0.0
        %403 = vmatpush2.msra.mxu0 0.0
        %404 = vmatprep.subr.mxu0 0.0
        %405 = vmatpush2.msra.mxu0 0.0
        %406 = vmatprep.subr.mxu0 0.0
        %407 = vmatpush2.msra.mxu0 0.0
        %408 = vmatprep.subr.mxu0 0.0
        %409 = vmatpush2.msra.mxu0 0.0
        %410 = vmatprep.subr.mxu0 0.0
        %411 = vmatpush2.msra.mxu0 0.0
        %412 = vmatprep.subr.mxu0 0.0
        %413 = vmatpush2.msra.mxu0 0.0
        %414 = vmatprep.subr.mxu0 0.0
        %415 = vmatpush2.msra.mxu0 0.0
        %416 = vmatprep.subr.mxu0 0.0
        %417 = vmatpush2.msra.mxu0 0.0
        %418 = vmatprep.subr.mxu0 0.0
        %419 = vmatpush2.msra.mxu0 0.0
        %420 = vmatprep.mubr.f32.mxu0 0.0
        %421 = vmatmul.mubr.f32.gmra.mxu0 %v354
        %v422 = vpop.f32.mrf.mxu0
        %v423 = vadd.f32 0.0, %v422
        %v424 = vpop.f32.mrf.mxu0
        %425 = vdwg.mxu0
        %426 = vst [vmem:[%s250] sm:$0x3] %v423
        %s427 = sand.u32 %s122, 1
        %s428 = scalar_lea.sflag [#allocation4], %s427
        %s429 = sand.u32 %s122, 1
        %s430 = smul.addr %s429, 2
        %s431 = scalar_lea.vmem [#allocation8], %s430
        // Predicated region
        $region49: #{tpu_custom_call.1} parent=35 // pred_check
          %p432 = pneg %p132
        $region50: #{tpu_custom_call.1} parent=35 // pred_check_branch
          %434 = sbr.rel (%p432) target = $region52
        $region51: #{tpu_custom_call.1} parent=35 // pred_region
          %s436 = ssub.s32 32, 32
          %437 = vsyncadd %s428, %s436
          %s438 = smul.addr %s20, 32
          %s439 = scalar_lea.hbm %s4, %s438
          %s441 = sshll.u32 %s431, 4
          %s442 = int_to_ptr.vmem [resolvable:$true] %s441
          %444 = dma.vmem_to_hbm [thread:$0]  %s442, 32, %s439, %s428
        $region52: #{tpu_custom_call.1} parent=35 // pred_fallthru
          _
      $region36: #{tpu_custom_call.1} parent=5 // pred_fallthru
        _
      %p445 = scmp.le.s32.totalorder 2, %s15
      // Predicated region
      $region53: #{tpu_custom_call.1} parent=5 // pred_check
        %p446 = pneg %p445
      $region54: #{tpu_custom_call.1} parent=5 // pred_check_branch
        %448 = sbr.rel (%p446) target = $region56
      $region55: #{tpu_custom_call.1} parent=5 // pred_region
        %s449 = ssub.s32 %s15, 2
        // Predicated region
        $region57: #{tpu_custom_call.1} parent=55 // pred_check
          %p450 = pneg %p138
        $region58: #{tpu_custom_call.1} parent=55 // pred_check_branch
          %452 = sbr.rel (%p450) target = $region60
        $region59: #{tpu_custom_call.1} parent=55 // pred_region
          %s453 = sand.u32 %s123, 1
          %s454 = scalar_lea.sflag [#allocation4], %s453
          %s455 = sand.u32 %s123, 1
          %s456 = smul.addr %s455, 2
          %s457 = scalar_lea.vmem [#allocation8], %s456
          %458 = dma.done %s454, 32
        $region60: #{tpu_custom_call.1} parent=55 // pred_fallthru
          _
      $region56: #{tpu_custom_call.1} parent=5 // pred_fallthru
        _
    $region6: #{tpu_custom_call.1} parent=1 // loop_footer
      %s19 = sadd.s32 1, %s15
    $region7: #{tpu_custom_call.1} parent=1 // loop_footer_branch
      %14 = sbr.rel target = $region3
    $region8: #{tpu_custom_call.1} parent=1 // loop_exit
      _
    %459 = vsyncpa [#allocation3], 1
    %s460 = scalar_lea.sflag [#allocation3], 1
    %461 = vsyncpa %s460, 1
    %462 = vsyncpa [#allocation6], 1
    %463 = vsyncpa [#allocation4], 1
    %s464 = scalar_lea.sflag [#allocation4], 1
    %465 = vsyncpa %s464, 1

</llo_original>
